<compile_context>
chip_gen: v7x
topology: tpu7x:2x2x1
jax: 0.10.0
libtpu: 0.0.40
codegen_flags: <defaults>
</compile_context>

<pallas_src>
import math

import jax
import jax.numpy as jnp
import numpy as np
from jax.experimental import pallas as pl
from jax.experimental.pallas import tpu as pltpu


def _make_coords(dims):
    # Normalized factorized-position grid in [-1, 1], (dt, ht, wt) row-major,
    # mirroring mit_ub's create_grid(..., normalize=True).
    axes = [jnp.linspace(-1.0, 1.0, d, dtype=jnp.float32) for d in dims]
    grid = jnp.stack(jnp.meshgrid(*axes, indexing="ij"), axis=-1)
    return grid.reshape(-1, len(dims))


def _pos_encoding(dims, w1, b1, w2p, b2p):
    # RelativeFactorizedPosition MLP (norm=False, dropout no-op).  Tiny (L x E) and
    # shape-only, so it is computed once in plain JAX instead of a dedicated
    # pallas_call (a K=3 contraction would waste the MXU).
    coords = _make_coords(dims)                                   # (L, 3)
    h = coords @ w1.T + b1
    # TODO(synk): DEFAULT_POS_ENC_ACTIVATION assumed to be relu^2 (mit_ub default).
    h = jnp.square(jnp.maximum(h, 0.0))
    return (h @ w2p.T + b2p).astype(jnp.float32)                  # (L, E)


def _vmem_capacity_bytes():
    try:
        return int(pltpu.get_tpu_info().vmem_capacity_bytes)
    except Exception:
        return 128 << 20                                          # safe default


# ---------------------------------------------------------------------------
# Pallas kernel: patch embed matmul + pos add + adaptive pool + layer norms.
# ---------------------------------------------------------------------------
def _make_tokenizer_kernel(plane_rows, Ht, Wt, th, tw, windows_d,
                           pool_type, eps, even_hw):
    tt = th * tw
    is_max = pool_type == "max"
    Hw = Ht // th if even_hw else 0
    Ww = Wt // tw if even_hw else 0

    def combine(a, b):
        return jnp.maximum(a, b) if is_max else a + b

    def kernel(xp_ref, wt_ref, pos_ref, wn_ref, bn_ref,
               pooled_ref, tok_ref, scr_ref):
        # Patch embedding: bf16 MXU matmul with f32 accumulation; the input bias
        # is pre-folded into the bf16 pos table host-side.
        emb = jnp.dot(xp_ref[0], wt_ref[...], preferred_element_type=jnp.float32)
        emb = emb + pos_ref[...].astype(jnp.float32)              # (rows, E) f32

        wn = wn_ref[...]
        bn = bn_ref[...]

        def layer_norm(v):
            # Two-pass statistics: v is VMEM resident, so the extra traversal is
            # essentially free and numerically safe.
            mu = jnp.mean(v, axis=-1, keepdims=True)
            c = v - mu
            var = jnp.mean(c * c, axis=-1, keepdims=True)
            return c * jax.lax.rsqrt(var + eps) * wn + bn

        tok_ref[0] = layer_norm(emb).astype(tok_ref.dtype)

        for wi, (d0, d1) in enumerate(windows_d):
            # ---- depth window: full-plane contiguous slab reduction ----
            plane = emb[d0 * plane_rows:(d0 + 1) * plane_rows, :]
            for d in range(d0 + 1, d1):
                plane = combine(plane, emb[d * plane_rows:(d + 1) * plane_rows, :])

            if even_hw:
                # ---- h windows: contiguous (Wt, E) slab reductions -> scratch ----
                for j in range(th):
                    strip = plane[j * Hw * Wt:(j * Hw + 1) * Wt, :]
                    for a in range(1, Hw):
                        r0 = (j * Hw + a) * Wt
                        strip = combine(strip, plane[r0:r0 + Wt, :])
                    scr_ref[j * Wt:(j + 1) * Wt, :] = strip
                # ---- w windows: Ww strided VMEM loads give all th*tw pooled rows
                # at once, already in (j, k) row-major order.  (This lowers to
                # strided vector loads; if a future Mosaic scalarizes it, switch to
                # a (tt, Ww, E) reshape + axis=1 reduction.) ----
                if Ww == 1:
                    pooled = scr_ref[0:tt, :]
                else:
                    pooled = scr_ref[pl.ds(0, tt, stride=Ww), :]
                    for b in range(1, Ww):
                        pooled = combine(pooled, scr_ref[pl.ds(b, tt, stride=Ww), :])
                if not is_max:
                    pooled = pooled * (1.0 / float((d1 - d0) * Hw * Ww))
            else:
                # General (non-even) adaptive windows: multi-row contiguous slabs,
                # PyTorch floor/ceil semantics and per-window counts for avg.
                rows_out = []
                for j in range(th):
                    h0, h1 = (j * Ht) // th, -(-((j + 1) * Ht) // th)
                    strip = plane[h0 * Wt:(h0 + 1) * Wt, :]
                    for hh in range(h0 + 1, h1):
                        strip = combine(strip, plane[hh * Wt:(hh + 1) * Wt, :])
                    for k in range(tw):
                        w0, w1 = (k * Wt) // tw, -(-((k + 1) * Wt) // tw)
                        win = strip[w0:w1, :]
                        if is_max:
                            rows_out.append(jnp.max(win, axis=0, keepdims=True))
                        else:
                            cnt = (d1 - d0) * (h1 - h0) * (w1 - w0)
                            rows_out.append(jnp.sum(win, axis=0, keepdims=True)
                                            * (1.0 / float(cnt)))
                pooled = jnp.concatenate(rows_out, axis=0)

            # Direct per-window store: no concat copy, short live ranges.
            pooled_ref[0, wi * tt:(wi + 1) * tt, :] = (
                layer_norm(pooled).astype(pooled_ref.dtype))

    return kernel


def adaptive_tokenizer_3d(x, params, patch_size, target_shape,
                          pool_type="max", eps=1e-5):
    """Returns (pooled, tokens) = ((B, Lt, E), (B, L, E)) in bf16, matching the
    torch module's forward semantics (within bf16 rounding)."""
    B, C, D, H, W = x.shape
    pd, ph, pw = patch_size
    Dt, Ht, Wt = D // pd, H // ph, W // pw
    td, th, tw = (s // p for s, p in zip(target_shape, patch_size))
    plane_rows = Ht * Wt
    L = Dt * plane_rows
    tt = th * tw
    Lt = td * tt
    Din = pd * ph * pw * C
    E = params["w_in"].shape[0]                  # embedding dim, deliberately UNPADDED

    # ---- HBM-side layout prep (bf16 to halve the rearrange pass) --------------
    # 'b c (dt dp)(ht hp)(wt wp) -> b (dt ht wt) (dp hp wp c)'
    # TODO(synk): folding this rearrange into the kernel (memory_space=pl.ANY +
    # in-VMEM swizzle) would save one xp HBM round trip, but the required high-rank
    # transpose does not lower reliably in Mosaic; kept in XLA (bf16) for now.
    xb = x.astype(jnp.bfloat16)
    xp = xb.reshape(B, C, Dt, pd, Ht, ph, Wt, pw)
    xp = xp.transpose(0, 2, 4, 6, 3, 5, 7, 1).reshape(B, L, Din)

    w_in_t = params["w_in"].T.astype(jnp.bfloat16)                       # (Din, E)
    w_norm = params["w_norm"].reshape(1, E).astype(jnp.float32)
    b_norm = params["b_norm"].reshape(1, E).astype(jnp.float32)

    # pos MLP output with b_in folded in, stored bf16 (halves pos HBM/VMEM bytes).
    pos = _pos_encoding((Dt, Ht, Wt),
                        params["w1_pos"].astype(jnp.float32),
                        params["b1_pos"].astype(jnp.float32),
                        params["w2_pos"].astype(jnp.float32),
                        params["b2_pos"].astype(jnp.float32))            # (L, E)
    pos_b = (pos + params["b_in"].astype(jnp.float32)[None, :]).astype(jnp.bfloat16)

    # ---- VMEM budget, derived from the actual generation -----------------------
    vmem_cap = _vmem_capacity_bytes()
    # ~40 MiB on 64-MiB (v7x) parts, ~80 MiB on 128-MiB (v5e/v6e) parts: leaves
    # headroom for Mosaic internal scratch and LN intermediates.
    vmem_limit = int(min((vmem_cap * 5) // 8, 96 << 20))
    # Per-row live bytes: xp (bf16, 2 buf) + pos (bf16) + tokens out (bf16, 2 buf)
    # + f32 emb + LayerNorm temporaries.
    per_row_bytes = 4 * Din + 20 * E
    scr_rows = -(-(th * Wt) // 8) * 8
    fixed_bytes = 2 * Din * E + 4 * scr_rows * E + (2 << 20)
    budget = max(vmem_limit // 2 - fixed_bytes, 1 << 20)
    max_rows = max(256, budget // per_row_bytes)

    # ---- token tiling: groups of whole adaptive-pool depth windows ------------
    g = None
    if Dt % td == 0:
        DW = Dt // td
        valid = []
        for cand in range(1, td + 1):
            if td % cand:
                continue
            rows_c = cand * DW * plane_rows
            prow_c = cand * tt
            if rows_c != L and rows_c % 16:      # bf16 sublane alignment
                continue
            if prow_c != Lt and prow_c % 16:     # bf16 sublane alignment
                continue
            valid.append((cand, rows_c))
        if valid:
            within = [c for c, r in valid if r <= max_rows]
            if within:
                if B % 2 == 1:
                    # Keep one even "parallel" axis so both v7x TensorCores get work.
                    balanced = [c for c in within if (td // c) % 2 == 0]
                    g = max(balanced) if balanced else max(within)
                else:
                    g = max(within)
            else:
                g = min(c for c, _ in valid)

    if g is None:
        # General adaptive depth windows (floor/ceil, possibly overlapping):
        # process the full token volume of one batch element per program.
        n_tiles, rows, prow = 1, L, Lt
        windows_d = [((i * Dt) // td, -(-((i + 1) * Dt) // td)) for i in range(td)]
    else:
        DW = Dt // td
        n_tiles, rows, prow = td // g, g * DW * plane_rows, g * tt
        windows_d = [(w * DW, (w + 1) * DW) for w in range(g)]

    even_hw = (Ht % th == 0) and (Wt % tw == 0)
    kernel = _make_tokenizer_kernel(plane_rows, Ht, Wt, th, tw, windows_d,
                                    pool_type, eps, even_hw)
    resident = pl.Buffered(1)                    # resident blocks: no 2nd VMEM buffer

    pooled, tokens = pl.pallas_call(
        kernel,
        grid=(n_tiles, B),                       # batch innermost: pos tile resident
        in_specs=[
            pl.BlockSpec((1, rows, Din), lambda i, b: (b, i, 0)),   # patch tokens
            pl.BlockSpec((Din, E), lambda i, b: (0, 0),
                         pipeline_mode=resident),                   # w_in^T (bf16)
            pl.BlockSpec((rows, E), lambda i, b: (i, 0),
                         pipeline_mode=resident),                   # pos + b_in (bf16)
            pl.BlockSpec((1, E), lambda i, b: (0, 0),
                         pipeline_mode=resident),                   # w_norm
            pl.BlockSpec((1, E), lambda i, b: (0, 0),
                         pipeline_mode=resident),                   # b_norm
        ],
        out_specs=(
            pl.BlockSpec((1, prow, E), lambda i, b: (b, i, 0)),     # pooled (bf16)
            pl.BlockSpec((1, rows, E), lambda i, b: (b, i, 0)),     # tokens (bf16)
        ),
        out_shape=(
            jax.ShapeDtypeStruct((B, Lt, E), jnp.bfloat16),
            jax.ShapeDtypeStruct((B, L, E), jnp.bfloat16),
        ),
        scratch_shapes=[pltpu.VMEM((scr_rows, E), jnp.float32)],
        compiler_params=pltpu.CompilerParams(
            dimension_semantics=("parallel", "parallel"),
            vmem_limit_bytes=vmem_limit,
        ),
    )(xp, w_in_t, pos_b, w_norm, b_norm)

    return pooled, tokens


# ---------------------------------------------------------------------------
# Pure-JAX f32 reference (correctness check only; test shapes divide evenly).
# ---------------------------------------------------------------------------
def reference(x, params, patch_size, target_shape, pool_type="max", eps=1e-5):
    B, C, D, H, W = x.shape
    pd, ph, pw = patch_size
    Dt, Ht, Wt = D // pd, H // ph, W // pw
    td, th, tw = (s // p for s, p in zip(target_shape, patch_size))
    L = Dt * Ht * Wt
    E = params["w_in"].shape[0]

    xp = x.reshape(B, C, Dt, pd, Ht, ph, Wt, pw)
    xp = xp.transpose(0, 2, 4, 6, 3, 5, 7, 1).reshape(B, L, -1).astype(jnp.float32)
    emb = xp @ params["w_in"].T + params["b_in"]

    coords = _make_coords((Dt, Ht, Wt))
    h = coords @ params["w1_pos"].T + params["b1_pos"]
    h = jnp.square(jnp.maximum(h, 0.0))
    pos = h @ params["w2_pos"].T + params["b2_pos"]
    emb = emb + pos[None]

    g = emb.reshape(B, td, Dt // td, th, Ht // th, tw, Wt // tw, E)
    pooled = g.max(axis=(2, 4, 6)) if pool_type == "max" else g.mean(axis=(2, 4, 6))
    pooled = pooled.reshape(B, td * th * tw, E)

    def layer_norm(v):
        mu = v.mean(-1, keepdims=True)
        var = ((v - mu) ** 2).mean(-1, keepdims=True)
        return (v - mu) * jax.lax.rsqrt(var + eps) * params["w_norm"] + params["b_norm"]

    return layer_norm(pooled), layer_norm(emb)


if __name__ == "__main__":
    B, C = 2, 3
    D = H = W = 8
    patch_size = (2, 2, 2)
    target_shape = (4, 4, 4)          # original-space target -> tokenized target (2,2,2)
    E = 32
    # TODO(synk): hidden width of RelativeFactorizedPosition MLP inferred (synthetic: 2*E).
    Hd = 2 * E
    Din = math.prod(patch_size) * C

    ks = jax.random.split(jax.random.PRNGKey(0), 8)
    params = {
        "w_in":   0.02 * jax.random.normal(ks[0], (E, Din), jnp.float32),
        "b_in":   0.01 * jax.random.normal(ks[1], (E,), jnp.float32),
        "w_norm": 1.0 + 0.1 * jax.random.normal(ks[2], (E,), jnp.float32),
        "b_norm": 0.1 * jax.random.normal(ks[3], (E,), jnp.float32),
        "w1_pos": 0.02 * jax.random.normal(ks[4], (Hd, 3), jnp.float32),
        "b1_pos": 0.01 * jax.random.normal(ks[5], (Hd,), jnp.float32),
        "w2_pos": 0.02 * jax.random.normal(ks[6], (E, Hd), jnp.float32),
        "b2_pos": 0.01 * jax.random.normal(ks[7], (E,), jnp.float32),
    }
    x = jax.random.normal(jax.random.PRNGKey(1), (B, C, D, H, W), jnp.float32)

    for pool_type in ("max", "avg"):
        run = jax.jit(lambda xx, pt=pool_type: adaptive_tokenizer_3d(
            xx, params, patch_size, target_shape, pool_type=pt))
        pooled, tokens = jax.block_until_ready(run(x))

        ref_pooled, ref_tokens = reference(x, params, patch_size, target_shape,
                                           pool_type=pool_type)
        assert pooled.shape == (B, 2 * 2 * 2, E) and tokens.shape == (B, 4 * 4 * 4, E)
        pooled_f = np.asarray(jnp.asarray(pooled, jnp.float32))
        tokens_f = np.asarray(jnp.asarray(tokens, jnp.float32))
        # bf16 matmul inputs / bf16 outputs (f32 accumulation & LN) vs pure-f32
        # reference -> loose tolerance.
        np.testing.assert_allclose(pooled_f, np.asarray(ref_pooled),
                                   rtol=5e-2, atol=5e-2)
        np.testing.assert_allclose(tokens_f, np.asarray(ref_tokens),
                                   rtol=5e-2, atol=5e-2)
    print("KERNEL_OK")
</pallas_src>

<mosaic_0001>
module attributes {stable_mosaic.version = 11 : i64} {
  func.func @kernel(%arg0: i32, %arg1: i32, %arg2: memref<1x64x24xbf16, #tpu.memory_space<vmem>>, %arg3: memref<24x32xbf16, #tpu.memory_space<vmem>>, %arg4: memref<64x32xbf16, #tpu.memory_space<vmem>>, %arg5: memref<1x32xf32, #tpu.memory_space<vmem>>, %arg6: memref<1x32xf32, #tpu.memory_space<vmem>>, %arg7: memref<1x8x32xbf16, #tpu.memory_space<vmem>>, %arg8: memref<1x64x32xbf16, #tpu.memory_space<vmem>>, %arg9: memref<8x32xf32, #tpu.memory_space<vmem>>) attributes {dimension_semantics = [#tpu.dimension_semantics<parallel>, #tpu.dimension_semantics<parallel>], iteration_bounds = array<i64: 1, 2>, scalar_prefetch = 0 : i64, scratch_operands = 1 : i64, tpu.core_type = #tpu.core_type<tc>, window_params = [{transform_indices = @transform_0, window_bounds = array<i64: 1, 64, 24>}, {pipeline_mode = #tpu.pipeline_mode<synchronous>, transform_indices = @transform_1, window_bounds = array<i64: 24, 32>}, {pipeline_mode = #tpu.pipeline_mode<synchronous>, transform_indices = @transform_2, window_bounds = array<i64: 64, 32>}, {pipeline_mode = #tpu.pipeline_mode<synchronous>, transform_indices = @transform_3, window_bounds = array<i64: 1, 32>}, {pipeline_mode = #tpu.pipeline_mode<synchronous>, transform_indices = @transform_4, window_bounds = array<i64: 1, 32>}, {transform_indices = @transform_5, window_bounds = array<i64: 1, 8, 32>}, {transform_indices = @transform_6, window_bounds = array<i64: 1, 64, 32>}]} {
    %c0 = arith.constant 0 : index
    %c0_0 = arith.constant 0 : index
    %c0_1 = arith.constant 0 : index
    %0 = vector.load %arg2[%c0, %c0_0, %c0_1] : memref<1x64x24xbf16, #tpu.memory_space<vmem>>, vector<1x64x24xbf16>
    %1 = vector.shape_cast %0 : vector<1x64x24xbf16> to vector<64x24xbf16>
    %c0_2 = arith.constant 0 : index
    %c0_3 = arith.constant 0 : index
    %2 = vector.load %arg3[%c0_2, %c0_3] : memref<24x32xbf16, #tpu.memory_space<vmem>>, vector<24x32xbf16>
    %cst = arith.constant dense<0.000000e+00> : vector<64x32xf32>
    %3 = tpu.matmul %1, %2, %cst {dimension_numbers = #tpu.dot_dimension_numbers<[1], [0], [0], [1], [0, 0, 1, 1], [], []>} : vector<64x24xbf16>, vector<24x32xbf16>, vector<64x32xf32> -> vector<64x32xf32>
    %c0_4 = arith.constant 0 : index
    %c0_5 = arith.constant 0 : index
    %4 = vector.load %arg4[%c0_4, %c0_5] : memref<64x32xbf16, #tpu.memory_space<vmem>>, vector<64x32xbf16>
    %5 = arith.extf %4 : vector<64x32xbf16> to vector<64x32xf32>
    %6 = arith.addf %3, %5 : vector<64x32xf32>
    %c0_6 = arith.constant 0 : index
    %c0_7 = arith.constant 0 : index
    %7 = vector.load %arg5[%c0_6, %c0_7] : memref<1x32xf32, #tpu.memory_space<vmem>>, vector<1x32xf32>
    %c0_8 = arith.constant 0 : index
    %c0_9 = arith.constant 0 : index
    %8 = vector.load %arg6[%c0_8, %c0_9] : memref<1x32xf32, #tpu.memory_space<vmem>>, vector<1x32xf32>
    %cst_10 = arith.constant dense<0.000000e+00> : vector<64xf32>
    %9 = vector.multi_reduction <add>, %6, %cst_10 [1] : vector<64x32xf32> to vector<64xf32>
    %10 = vector.shape_cast %9 : vector<64xf32> to vector<64x1xf32>
    %cst_11 = arith.constant 3.200000e+01 : f32
    %11 = vector.broadcast %cst_11 : f32 to vector<64x1xf32>
    %12 = arith.divf %10, %11 : vector<64x1xf32>
    %13 = vector.broadcast %12 : vector<64x1xf32> to vector<64x32xf32>
    %14 = arith.subf %6, %13 : vector<64x32xf32>
    %15 = arith.mulf %14, %14 : vector<64x32xf32>
    %cst_12 = arith.constant dense<0.000000e+00> : vector<64xf32>
    %16 = vector.multi_reduction <add>, %15, %cst_12 [1] : vector<64x32xf32> to vector<64xf32>
    %17 = vector.shape_cast %16 : vector<64xf32> to vector<64x1xf32>
    %cst_13 = arith.constant 3.200000e+01 : f32
    %18 = vector.broadcast %cst_13 : f32 to vector<64x1xf32>
    %19 = arith.divf %17, %18 : vector<64x1xf32>
    %cst_14 = arith.constant 9.99999974E-6 : f32
    %20 = vector.broadcast %cst_14 : f32 to vector<64x1xf32>
    %21 = arith.addf %19, %20 : vector<64x1xf32>
    %22 = math.rsqrt %21 : vector<64x1xf32>
    %23 = vector.broadcast %22 : vector<64x1xf32> to vector<64x32xf32>
    %24 = arith.mulf %14, %23 : vector<64x32xf32>
    %25 = vector.broadcast %7 : vector<1x32xf32> to vector<64x32xf32>
    %26 = arith.mulf %24, %25 : vector<64x32xf32>
    %27 = vector.broadcast %8 : vector<1x32xf32> to vector<64x32xf32>
    %28 = arith.addf %26, %27 : vector<64x32xf32>
    %29 = arith.truncf %28 : vector<64x32xf32> to vector<64x32xbf16>
    %c0_15 = arith.constant 0 : index
    %c0_16 = arith.constant 0 : index
    %c0_17 = arith.constant 0 : index
    %30 = vector.load %arg8[%c0_15, %c0_16, %c0_17] : memref<1x64x32xbf16, #tpu.memory_space<vmem>>, vector<1x64x32xbf16>
    %31 = vector.shape_cast %30 : vector<1x64x32xbf16> to vector<64x32xbf16>
    %32 = vector.shape_cast %29 : vector<64x32xbf16> to vector<1x64x32xbf16>
    tpu.vector_store %arg8[%c0_15, %c0_16, %c0_17], %32 {strides = array<i32>} : memref<1x64x32xbf16, #tpu.memory_space<vmem>>, vector<1x64x32xbf16>,
    %33 = vector.extract_strided_slice %6 {offsets = [0, 0], sizes = [16, 32], strides = [1, 1]} : vector<64x32xf32> to vector<16x32xf32>
    %34 = vector.extract_strided_slice %6 {offsets = [16, 0], sizes = [16, 32], strides = [1, 1]} : vector<64x32xf32> to vector<16x32xf32>
    %35 = arith.maximumf %33, %34 : vector<16x32xf32>
    %36 = vector.extract_strided_slice %35 {offsets = [0, 0], sizes = [4, 32], strides = [1, 1]} : vector<16x32xf32> to vector<4x32xf32>
    %37 = vector.extract_strided_slice %35 {offsets = [4, 0], sizes = [4, 32], strides = [1, 1]} : vector<16x32xf32> to vector<4x32xf32>
    %38 = arith.maximumf %36, %37 : vector<4x32xf32>
    %c0_18 = arith.constant 0 : index
    %c0_19 = arith.constant 0 : index
    %39 = vector.load %arg9[%c0_18, %c0_19] : memref<8x32xf32, #tpu.memory_space<vmem>>, vector<4x32xf32>
    tpu.vector_store %arg9[%c0_18, %c0_19], %38 {strides = array<i32>} : memref<8x32xf32, #tpu.memory_space<vmem>>, vector<4x32xf32>,
    %40 = vector.extract_strided_slice %35 {offsets = [8, 0], sizes = [4, 32], strides = [1, 1]} : vector<16x32xf32> to vector<4x32xf32>
    %41 = vector.extract_strided_slice %35 {offsets = [12, 0], sizes = [4, 32], strides = [1, 1]} : vector<16x32xf32> to vector<4x32xf32>
    %42 = arith.maximumf %40, %41 : vector<4x32xf32>
    %c4 = arith.constant 4 : index
    %c0_20 = arith.constant 0 : index
    %43 = vector.load %arg9[%c4, %c0_20] : memref<8x32xf32, #tpu.memory_space<vmem>>, vector<4x32xf32>
    tpu.vector_store %arg9[%c4, %c0_20], %42 {strides = array<i32>} : memref<8x32xf32, #tpu.memory_space<vmem>>, vector<4x32xf32>,
    %c0_21 = arith.constant 0 : index
    %c0_22 = arith.constant 0 : index
    %44 = tpu.strided_load %arg9[%c0_21, %c0_22] {strides = array<i32: 2, 1>} : memref<8x32xf32, #tpu.memory_space<vmem>>, vector<4x32xf32>
    %c1 = arith.constant 1 : index
    %c0_23 = arith.constant 0 : index
    %45 = tpu.strided_load %arg9[%c1, %c0_23] {strides = array<i32: 2, 1>} : memref<8x32xf32, #tpu.memory_space<vmem>>, vector<4x32xf32>
    %46 = arith.maximumf %44, %45 : vector<4x32xf32>
    %cst_24 = arith.constant dense<0.000000e+00> : vector<4xf32>
    %47 = vector.multi_reduction <add>, %46, %cst_24 [1] : vector<4x32xf32> to vector<4xf32>
    %48 = vector.shape_cast %47 : vector<4xf32> to vector<4x1xf32>
    %cst_25 = arith.constant 3.200000e+01 : f32
    %49 = vector.broadcast %cst_25 : f32 to vector<4x1xf32>
    %50 = arith.divf %48, %49 : vector<4x1xf32>
    %51 = vector.broadcast %50 : vector<4x1xf32> to vector<4x32xf32>
    %52 = arith.subf %46, %51 : vector<4x32xf32>
    %53 = arith.mulf %52, %52 : vector<4x32xf32>
    %cst_26 = arith.constant dense<0.000000e+00> : vector<4xf32>
    %54 = vector.multi_reduction <add>, %53, %cst_26 [1] : vector<4x32xf32> to vector<4xf32>
    %55 = vector.shape_cast %54 : vector<4xf32> to vector<4x1xf32>
    %cst_27 = arith.constant 3.200000e+01 : f32
    %56 = vector.broadcast %cst_27 : f32 to vector<4x1xf32>
    %57 = arith.divf %55, %56 : vector<4x1xf32>
    %cst_28 = arith.constant 9.99999974E-6 : f32
    %58 = vector.broadcast %cst_28 : f32 to vector<4x1xf32>
    %59 = arith.addf %57, %58 : vector<4x1xf32>
    %60 = math.rsqrt %59 : vector<4x1xf32>
    %61 = vector.broadcast %60 : vector<4x1xf32> to vector<4x32xf32>
    %62 = arith.mulf %52, %61 : vector<4x32xf32>
    %63 = vector.broadcast %7 : vector<1x32xf32> to vector<4x32xf32>
    %64 = arith.mulf %62, %63 : vector<4x32xf32>
    %65 = vector.broadcast %8 : vector<1x32xf32> to vector<4x32xf32>
    %66 = arith.addf %64, %65 : vector<4x32xf32>
    %67 = arith.truncf %66 : vector<4x32xf32> to vector<4x32xbf16>
    %c0_29 = arith.constant 0 : index
    %c0_30 = arith.constant 0 : index
    %c0_31 = arith.constant 0 : index
    %68 = vector.load %arg7[%c0_29, %c0_30, %c0_31] : memref<1x8x32xbf16, #tpu.memory_space<vmem>>, vector<1x4x32xbf16>
    %69 = vector.shape_cast %68 : vector<1x4x32xbf16> to vector<4x32xbf16>
    %70 = vector.shape_cast %67 : vector<4x32xbf16> to vector<1x4x32xbf16>
    tpu.vector_store %arg7[%c0_29, %c0_30, %c0_31], %70 {strides = array<i32>} : memref<1x8x32xbf16, #tpu.memory_space<vmem>>, vector<1x4x32xbf16>,
    %71 = vector.extract_strided_slice %6 {offsets = [32, 0], sizes = [16, 32], strides = [1, 1]} : vector<64x32xf32> to vector<16x32xf32>
    %72 = vector.extract_strided_slice %6 {offsets = [48, 0], sizes = [16, 32], strides = [1, 1]} : vector<64x32xf32> to vector<16x32xf32>
    %73 = arith.maximumf %71, %72 : vector<16x32xf32>
    %74 = vector.extract_strided_slice %73 {offsets = [0, 0], sizes = [4, 32], strides = [1, 1]} : vector<16x32xf32> to vector<4x32xf32>
    %75 = vector.extract_strided_slice %73 {offsets = [4, 0], sizes = [4, 32], strides = [1, 1]} : vector<16x32xf32> to vector<4x32xf32>
    %76 = arith.maximumf %74, %75 : vector<4x32xf32>
    %c0_32 = arith.constant 0 : index
    %c0_33 = arith.constant 0 : index
    %77 = vector.load %arg9[%c0_32, %c0_33] : memref<8x32xf32, #tpu.memory_space<vmem>>, vector<4x32xf32>
    tpu.vector_store %arg9[%c0_32, %c0_33], %76 {strides = array<i32>} : memref<8x32xf32, #tpu.memory_space<vmem>>, vector<4x32xf32>,
    %78 = vector.extract_strided_slice %73 {offsets = [8, 0], sizes = [4, 32], strides = [1, 1]} : vector<16x32xf32> to vector<4x32xf32>
    %79 = vector.extract_strided_slice %73 {offsets = [12, 0], sizes = [4, 32], strides = [1, 1]} : vector<16x32xf32> to vector<4x32xf32>
    %80 = arith.maximumf %78, %79 : vector<4x32xf32>
    %c4_34 = arith.constant 4 : index
    %c0_35 = arith.constant 0 : index
    %81 = vector.load %arg9[%c4_34, %c0_35] : memref<8x32xf32, #tpu.memory_space<vmem>>, vector<4x32xf32>
    tpu.vector_store %arg9[%c4_34, %c0_35], %80 {strides = array<i32>} : memref<8x32xf32, #tpu.memory_space<vmem>>, vector<4x32xf32>,
    %c0_36 = arith.constant 0 : index
    %c0_37 = arith.constant 0 : index
    %82 = tpu.strided_load %arg9[%c0_36, %c0_37] {strides = array<i32: 2, 1>} : memref<8x32xf32, #tpu.memory_space<vmem>>, vector<4x32xf32>
    %c1_38 = arith.constant 1 : index
    %c0_39 = arith.constant 0 : index
    %83 = tpu.strided_load %arg9[%c1_38, %c0_39] {strides = array<i32: 2, 1>} : memref<8x32xf32, #tpu.memory_space<vmem>>, vector<4x32xf32>
    %84 = arith.maximumf %82, %83 : vector<4x32xf32>
    %cst_40 = arith.constant dense<0.000000e+00> : vector<4xf32>
    %85 = vector.multi_reduction <add>, %84, %cst_40 [1] : vector<4x32xf32> to vector<4xf32>
    %86 = vector.shape_cast %85 : vector<4xf32> to vector<4x1xf32>
    %cst_41 = arith.constant 3.200000e+01 : f32
    %87 = vector.broadcast %cst_41 : f32 to vector<4x1xf32>
    %88 = arith.divf %86, %87 : vector<4x1xf32>
    %89 = vector.broadcast %88 : vector<4x1xf32> to vector<4x32xf32>
    %90 = arith.subf %84, %89 : vector<4x32xf32>
    %91 = arith.mulf %90, %90 : vector<4x32xf32>
    %cst_42 = arith.constant dense<0.000000e+00> : vector<4xf32>
    %92 = vector.multi_reduction <add>, %91, %cst_42 [1] : vector<4x32xf32> to vector<4xf32>
    %93 = vector.shape_cast %92 : vector<4xf32> to vector<4x1xf32>
    %cst_43 = arith.constant 3.200000e+01 : f32
    %94 = vector.broadcast %cst_43 : f32 to vector<4x1xf32>
    %95 = arith.divf %93, %94 : vector<4x1xf32>
    %cst_44 = arith.constant 9.99999974E-6 : f32
    %96 = vector.broadcast %cst_44 : f32 to vector<4x1xf32>
    %97 = arith.addf %95, %96 : vector<4x1xf32>
    %98 = math.rsqrt %97 : vector<4x1xf32>
    %99 = vector.broadcast %98 : vector<4x1xf32> to vector<4x32xf32>
    %100 = arith.mulf %90, %99 : vector<4x32xf32>
    %101 = vector.broadcast %7 : vector<1x32xf32> to vector<4x32xf32>
    %102 = arith.mulf %100, %101 : vector<4x32xf32>
    %103 = vector.broadcast %8 : vector<1x32xf32> to vector<4x32xf32>
    %104 = arith.addf %102, %103 : vector<4x32xf32>
    %105 = arith.truncf %104 : vector<4x32xf32> to vector<4x32xbf16>
    %c0_45 = arith.constant 0 : index
    %c4_46 = arith.constant 4 : index
    %c0_47 = arith.constant 0 : index
    %106 = vector.load %arg7[%c0_45, %c4_46, %c0_47] : memref<1x8x32xbf16, #tpu.memory_space<vmem>>, vector<1x4x32xbf16>
    %107 = vector.shape_cast %106 : vector<1x4x32xbf16> to vector<4x32xbf16>
    %108 = vector.shape_cast %105 : vector<4x32xbf16> to vector<1x4x32xbf16>
    tpu.vector_store %arg7[%c0_45, %c4_46, %c0_47], %108 {strides = array<i32>} : memref<1x8x32xbf16, #tpu.memory_space<vmem>>, vector<1x4x32xbf16>,
    return
  }
  func.func @transform_0(%arg0: i32, %arg1: i32) -> (i32, i32, i32) {
    %c0_i32 = arith.constant 0 : i32
    %c0_i32_0 = arith.constant 0 : i32
    return %arg1, %arg0, %c0_i32 : i32, i32, i32
  }
  func.func @transform_1(%arg0: i32, %arg1: i32) -> (i32, i32) {
    %c0_i32 = arith.constant 0 : i32
    %c0_i32_0 = arith.constant 0 : i32
    %c0_i32_1 = arith.constant 0 : i32
    return %c0_i32, %c0_i32_0 : i32, i32
  }
  func.func @transform_2(%arg0: i32, %arg1: i32) -> (i32, i32) {
    %c0_i32 = arith.constant 0 : i32
    %c0_i32_0 = arith.constant 0 : i32
    return %arg0, %c0_i32 : i32, i32
  }
  func.func @transform_3(%arg0: i32, %arg1: i32) -> (i32, i32) {
    %c0_i32 = arith.constant 0 : i32
    %c0_i32_0 = arith.constant 0 : i32
    %c0_i32_1 = arith.constant 0 : i32
    return %c0_i32, %c0_i32_0 : i32, i32
  }
  func.func @transform_4(%arg0: i32, %arg1: i32) -> (i32, i32) {
    %c0_i32 = arith.constant 0 : i32
    %c0_i32_0 = arith.constant 0 : i32
    %c0_i32_1 = arith.constant 0 : i32
    return %c0_i32, %c0_i32_0 : i32, i32
  }
  func.func @transform_5(%arg0: i32, %arg1: i32) -> (i32, i32, i32) {
    %c0_i32 = arith.constant 0 : i32
    %c0_i32_0 = arith.constant 0 : i32
    return %arg1, %arg0, %c0_i32 : i32, i32, i32
  }
  func.func @transform_6(%arg0: i32, %arg1: i32) -> (i32, i32, i32) {
    %c0_i32 = arith.constant 0 : i32
    %c0_i32_0 = arith.constant 0 : i32
    return %arg1, %arg0, %c0_i32 : i32, i32, i32
  }
}

</mosaic_0001>

<llo_original>
// kernel: _lambda_.1
$region0: #{_lambda_.1}
  #allocation0 [shape = 'u32[]', space=smem, size = 0x4, offset = 0x4, fixed_abs, tag = 'smem constant byte address 0x4 - core index']
  #allocation1 [shape = 'u32[144,128]{1,0:T(1,128)}', space=vmem, size = 0x12000, scoped, tag = 'internal scratch']
  #allocation2 [shape = 'f32[8,32]{1,0:T(8,128)}', space=vmem, size = 0x1000, scoped, tag = 'scratch operand']
  %s0 = inlined_call_operand.hbm [shape: bf16[2,64,24], index: 0, kind: input, shape index: {}]
  %s1 = inlined_call_operand.hbm [shape: bf16[24,32], index: 1, kind: input, shape index: {}]
  %s2 = inlined_call_operand.hbm [shape: bf16[64,32], index: 2, kind: input, shape index: {}]
  %s3 = inlined_call_operand.hbm [shape: f32[1,32], index: 3, kind: input, shape index: {}]
  %s4 = inlined_call_operand.hbm [shape: f32[1,32], index: 4, kind: input, shape index: {}]
  %s5 = inlined_call_operand.hbm [shape: bf16[2,8,32], index: 5, kind: output, shape index: {0}]
  %s6 = inlined_call_operand.hbm [shape: bf16[2,64,32], index: 6, kind: output, shape index: {1}]
  %7 = xla_tuple %s5, %s6
  %s8 = sld [smem:[#allocation0]]
  $region81: #{_lambda_.1} parent=0
    _
  %s10 = ssub.s32 1, %s8
  %s11 = scalar_select 0, %s10, %s8
  $region1: #{_lambda_.1} parent=0
    #allocation3 [shape = 'u8[32768]{0}', space=vmem, size = 0x8000, scoped, tag = 'input window, operand 0']
    #allocation4 [shape = 's32[2]{0}', space=sflag, size = 0x8, scoped, tag = 'scoped memory for _lambda_.1']
    #allocation5 [shape = 's32[2]{0}', space=sflag, size = 0x8, scoped, tag = 'scoped memory for _lambda_.1']
    #allocation6 [shape = 'u8[6144]{0}', space=vmem, size = 0x1800, scoped, tag = 'input window, operand 1, single buffered']
    #allocation7 [shape = 's32[1]{0}', space=sflag, size = 0x4, scoped, tag = 'scoped memory for _lambda_.1']
    #allocation8 [shape = 'u8[16384]{0}', space=vmem, size = 0x4000, scoped, tag = 'input window, operand 2, single buffered']
    #allocation9 [shape = 'u8[512]{0}', space=vmem, size = 0x400, scoped, tag = 'input window, operand 3, single buffered']
    #allocation10 [shape = 's32[1]{0}', space=sflag, size = 0x4, scoped, tag = 'scoped memory for _lambda_.1']
    #allocation11 [shape = 'u8[512]{0}', space=vmem, size = 0x400, scoped, tag = 'input window, operand 4, single buffered']
    #allocation12 [shape = 'u8[4096]{0}', space=vmem, size = 0x1000, scoped, tag = 'output window, operand 0']
    #allocation13 [shape = 'u8[32768]{0}', space=vmem, size = 0x8000, scoped, tag = 'output window, operand 1']
    #allocation14 [shape = 's32[2]{0}', space=sflag, size = 0x8, scoped, tag = 'scoped memory for _lambda_.1']
    %12 = vsyncpa [#allocation4], 0
    %s13 = scalar_lea.sflag [#allocation4], 1
    %14 = vsyncpa %s13, 0
    %15 = vsyncpa [#allocation7], 0
    %16 = vsyncpa [#allocation10], 0
    %17 = vsyncpa [#allocation5], 0
    %s18 = scalar_lea.sflag [#allocation5], 1
    %19 = vsyncpa %s18, 0
    %20 = vsyncpa [#allocation14], 0
    %s21 = scalar_lea.sflag [#allocation14], 1
    %22 = vsyncpa %s21, 0
    loop: start=0, step=1, limit=4
    $region2: #{_lambda_.1} parent=1 // loop_pre_header
      _
    $region3: #{_lambda_.1} parent=1 // loop_header
      %s24 = sphi 0, %s28
      %p25 = scmp.ge.s32.totalorder %s24, 4
      %s31 = sphi 0, %s43
      %s32 = sphi 0, %s39
      %s33 = sphi 0, %s31
      %s34 = sphi 0, %s32
      %s35 = sphi 0, %s33
      %s36 = sphi 0, %s34
      %s48 = sphi 0, %s50
      %s51 = sphi 0, %s48
      %s52 = sphi 0, %s51
      %s68 = sphi 0, %s52
      %s72 = sphi 0, %s72
      %s74 = sphi 0, %s72
      %s75 = sphi 0, %s74
      %s89 = sphi 0, %s75
      %s95 = sphi 0, %s97
      %s98 = sphi 0, %s95
      %s99 = sphi 0, %s98
      %s115 = sphi 0, %s99
      %s119 = sphi 0, %s119
      %s121 = sphi 0, %s119
      %s122 = sphi 0, %s121
      %s136 = sphi 0, %s122
      %s140 = sphi 0, %s140
      %s142 = sphi 0, %s140
      %s143 = sphi 0, %s142
      %s157 = sphi 0, %s143
      %s165 = sphi 0, %s167
      %s168 = sphi 0, %s165
      %s169 = sphi 0, %s168
      %s185 = sphi 0, %s169
      %s193 = sphi 0, %s195
      %s196 = sphi 0, %s193
      %s197 = sphi 0, %s196
      %s213 = sphi 0, %s197
    $region4: #{_lambda_.1} parent=1 // loop_header_branch
      %27 = sbr.rel (%p25) target = $region8
    $region5: #{_lambda_.1} parent=1 // loop_body
      %s29 = ssub.s32 %s24, 1
      %s30 = ssub.s32 %s24, 2
      %s37 = sadd.s32 1, %s32
      %p38 = scmp.ge.s32.totalorder %s37, 2
      %s39 = scalar_select %p38, 0, %s37
      %s40 = sadd.s32 1, %s31
      %s41 = scalar_select %p38, %s40, %s31
      %p42 = scmp.ge.s32.totalorder %s41, 1
      %s43 = scalar_select %p42, 0, %s41
      %s44 = ssub.s32 %s32, %s39
      %s45 = ssub.s32 %s31, %s43
      %s46 = sor.u32 %s44, %s45
      %p47 = scmp.eq.s32.totalorder %s46, 0
      %s49 = sadd.s32 %s48, 1
      %s50 = scalar_select %p47, %s48, %s49
      %p53 = pneg %p47
      %p54 = scmp.eq.s32.totalorder %s24, 1
      %p55 = por %p53, %p54
      %p56 = scmp.ne.s32.totalorder %s48, %s51
      %p57 = scmp.eq.s32.totalorder %s24, 0
      %p58 = por %p56, %p57
      %p59 = scmp.ne.s32.totalorder %s48, %s51
      %p60 = scmp.eq.s32.totalorder %s29, 1
      %p61 = por %p59, %p60
      %p62 = scmp.ne.s32.totalorder %s51, %s52
      %p63 = scmp.eq.s32.totalorder %s29, 0
      %p64 = por %p62, %p63
      %p65 = scmp.ne.s32.totalorder %s51, %s52
      %p66 = scmp.eq.s32.totalorder %s30, 1
      %p67 = por %p65, %p66
      %p69 = scmp.ne.s32.totalorder %s52, %s68
      %p70 = scmp.eq.s32.totalorder %s30, 0
      %p71 = por %p69, %p70
      %s73 = sadd.s32 %s72, 1
      %p76 = scmp.eq.s32.totalorder %s24, 1
      %p77 = scmp.ne.s32.totalorder %s72, %s74
      %p78 = scmp.eq.s32.totalorder %s24, 0
      %p79 = por %p77, %p78
      %p80 = scmp.ne.s32.totalorder %s72, %s74
      %p81 = scmp.eq.s32.totalorder %s29, 1
      %p82 = por %p80, %p81
      %p83 = scmp.ne.s32.totalorder %s74, %s75
      %p84 = scmp.eq.s32.totalorder %s29, 0
      %p85 = por %p83, %p84
      %p86 = scmp.ne.s32.totalorder %s74, %s75
      %p87 = scmp.eq.s32.totalorder %s30, 1
      %p88 = por %p86, %p87
      %p90 = scmp.ne.s32.totalorder %s75, %s89
      %p91 = scmp.eq.s32.totalorder %s30, 0
      %p92 = por %p90, %p91
      %s93 = ssub.s32 %s31, %s43
      %p94 = scmp.eq.s32.totalorder %s93, 0
      %s96 = sadd.s32 %s95, 1
      %s97 = scalar_select %p94, %s95, %s96
      %p100 = pneg %p94
      %p101 = scmp.eq.s32.totalorder %s24, 1
      %p102 = por %p100, %p101
      %p103 = scmp.ne.s32.totalorder %s95, %s98
      %p104 = scmp.eq.s32.totalorder %s24, 0
      %p105 = por %p103, %p104
      %p106 = scmp.ne.s32.totalorder %s95, %s98
      %p107 = scmp.eq.s32.totalorder %s29, 1
      %p108 = por %p106, %p107
      %p109 = scmp.ne.s32.totalorder %s98, %s99
      %p110 = scmp.eq.s32.totalorder %s29, 0
      %p111 = por %p109, %p110
      %p112 = scmp.ne.s32.totalorder %s98, %s99
      %p113 = scmp.eq.s32.totalorder %s30, 1
      %p114 = por %p112, %p113
      %p116 = scmp.ne.s32.totalorder %s99, %s115
      %p117 = scmp.eq.s32.totalorder %s30, 0
      %p118 = por %p116, %p117
      %s120 = sadd.s32 %s119, 1
      %p123 = scmp.eq.s32.totalorder %s24, 1
      %p124 = scmp.ne.s32.totalorder %s119, %s121
      %p125 = scmp.eq.s32.totalorder %s24, 0
      %p126 = por %p124, %p125
      %p127 = scmp.ne.s32.totalorder %s119, %s121
      %p128 = scmp.eq.s32.totalorder %s29, 1
      %p129 = por %p127, %p128
      %p130 = scmp.ne.s32.totalorder %s121, %s122
      %p131 = scmp.eq.s32.totalorder %s29, 0
      %p132 = por %p130, %p131
      %p133 = scmp.ne.s32.totalorder %s121, %s122
      %p134 = scmp.eq.s32.totalorder %s30, 1
      %p135 = por %p133, %p134
      %p137 = scmp.ne.s32.totalorder %s122, %s136
      %p138 = scmp.eq.s32.totalorder %s30, 0
      %p139 = por %p137, %p138
      %s141 = sadd.s32 %s140, 1
      %p144 = scmp.eq.s32.totalorder %s24, 1
      %p145 = scmp.ne.s32.totalorder %s140, %s142
      %p146 = scmp.eq.s32.totalorder %s24, 0
      %p147 = por %p145, %p146
      %p148 = scmp.ne.s32.totalorder %s140, %s142
      %p149 = scmp.eq.s32.totalorder %s29, 1
      %p150 = por %p148, %p149
      %p151 = scmp.ne.s32.totalorder %s142, %s143
      %p152 = scmp.eq.s32.totalorder %s29, 0
      %p153 = por %p151, %p152
      %p154 = scmp.ne.s32.totalorder %s142, %s143
      %p155 = scmp.eq.s32.totalorder %s30, 1
      %p156 = por %p154, %p155
      %p158 = scmp.ne.s32.totalorder %s143, %s157
      %p159 = scmp.eq.s32.totalorder %s30, 0
      %p160 = por %p158, %p159
      %s161 = ssub.s32 %s32, %s39
      %s162 = ssub.s32 %s31, %s43
      %s163 = sor.u32 %s161, %s162
      %p164 = scmp.eq.s32.totalorder %s163, 0
      %s166 = sadd.s32 %s165, 1
      %s167 = scalar_select %p164, %s165, %s166
      %p170 = pneg %p164
      %p171 = scmp.eq.s32.totalorder %s24, 1
      %p172 = por %p170, %p171
      %p173 = scmp.ne.s32.totalorder %s165, %s168
      %p174 = scmp.eq.s32.totalorder %s24, 0
      %p175 = por %p173, %p174
      %p176 = scmp.ne.s32.totalorder %s165, %s168
      %p177 = scmp.eq.s32.totalorder %s29, 1
      %p178 = por %p176, %p177
      %p179 = scmp.ne.s32.totalorder %s168, %s169
      %p180 = scmp.eq.s32.totalorder %s29, 0
      %p181 = por %p179, %p180
      %p182 = scmp.ne.s32.totalorder %s168, %s169
      %p183 = scmp.eq.s32.totalorder %s30, 1
      %p184 = por %p182, %p183
      %p186 = scmp.ne.s32.totalorder %s169, %s185
      %p187 = scmp.eq.s32.totalorder %s30, 0
      %p188 = por %p186, %p187
      %s189 = ssub.s32 %s32, %s39
      %s190 = ssub.s32 %s31, %s43
      %s191 = sor.u32 %s189, %s190
      %p192 = scmp.eq.s32.totalorder %s191, 0
      %s194 = sadd.s32 %s193, 1
      %s195 = scalar_select %p192, %s193, %s194
      %p198 = pneg %p192
      %p199 = scmp.eq.s32.totalorder %s24, 1
      %p200 = por %p198, %p199
      %p201 = scmp.ne.s32.totalorder %s193, %s196
      %p202 = scmp.eq.s32.totalorder %s24, 0
      %p203 = por %p201, %p202
      %p204 = scmp.ne.s32.totalorder %s193, %s196
      %p205 = scmp.eq.s32.totalorder %s29, 1
      %p206 = por %p204, %p205
      %p207 = scmp.ne.s32.totalorder %s196, %s197
      %p208 = scmp.eq.s32.totalorder %s29, 0
      %p209 = por %p207, %p208
      %p210 = scmp.ne.s32.totalorder %s196, %s197
      %p211 = scmp.eq.s32.totalorder %s30, 1
      %p212 = por %p210, %p211
      %p214 = scmp.ne.s32.totalorder %s197, %s213
      %p215 = scmp.eq.s32.totalorder %s30, 0
      %p216 = por %p214, %p215
      %p217 = scmp.le.s32.totalorder 1, %s24
      %p218 = scmp.lt.s32.totalorder %s24, 3
      %p219 = pnand %p217, %p218
      %p220 = pneg %p219
      // Predicated region
      $region9: #{_lambda_.1} parent=5 // pred_check
        _
      $region10: #{_lambda_.1} parent=5 // pred_check_branch
        %222 = sbr.rel (%p219) target = $region12
      $region11: #{_lambda_.1} parent=5 // pred_region
        %s223 = ssub.s32 %s24, 1
        // Predicated region
        $region13: #{_lambda_.1} parent=11 // pred_check
          %p224 = pneg %p85
        $region14: #{_lambda_.1} parent=11 // pred_check_branch
          %226 = sbr.rel (%p224) target = $region16
        $region15: #{_lambda_.1} parent=11 // pred_region
          %s228 = ssub.s32 192, 192
          %229 = vsyncadd [#allocation7], %s228
          %s230 = sshll.u32 [#allocation6], 4
          %s231 = int_to_ptr.vmem [resolvable:$true] %s230
          %236 = dma.hbm_to_vmem [thread:$0]  %s1, 192, %s231, [#allocation7], 64, 64, 4
        $region16: #{_lambda_.1} parent=11 // pred_fallthru
          _
        // Predicated region
        $region17: #{_lambda_.1} parent=11 // pred_check
          %p237 = pneg %p111
        $region18: #{_lambda_.1} parent=11 // pred_check_branch
          %239 = sbr.rel (%p237) target = $region20
        $region19: #{_lambda_.1} parent=11 // pred_region
          %s240 = smul.u32 8, %s33
          %s242 = ssub.s32 512, 512
          %243 = vsyncadd [#allocation7], %s242
          %s244 = smul.addr %s240, 64
          %s245 = scalar_lea.hbm %s2, %s244
          %s246 = sshll.u32 [#allocation8], 4
          %s247 = int_to_ptr.vmem [resolvable:$true] %s246
          %252 = dma.hbm_to_vmem [thread:$0]  %s245, 512, %s247, [#allocation7], 64, 64, 4
        $region20: #{_lambda_.1} parent=11 // pred_fallthru
          _
        // Predicated region
        $region21: #{_lambda_.1} parent=11 // pred_check
          %p253 = pneg %p132
        $region22: #{_lambda_.1} parent=11 // pred_check_branch
          %255 = sbr.rel (%p253) target = $region24
        $region23: #{_lambda_.1} parent=11 // pred_region
          %s257 = ssub.s32 16, 16
          %258 = vsyncadd [#allocation10], %s257
          %s260 = sshll.u32 [#allocation9], 4
          %s261 = int_to_ptr.vmem [resolvable:$true] %s260
          %263 = dma.hbm_to_vmem [thread:$0]  %s3, 16, %s261, [#allocation10]
        $region24: #{_lambda_.1} parent=11 // pred_fallthru
          _
        // Predicated region
        $region25: #{_lambda_.1} parent=11 // pred_check
          %p264 = pneg %p153
        $region26: #{_lambda_.1} parent=11 // pred_check_branch
          %266 = sbr.rel (%p264) target = $region28
        $region27: #{_lambda_.1} parent=11 // pred_region
          %s268 = ssub.s32 16, 16
          %269 = vsyncadd [#allocation10], %s268
          %s271 = sshll.u32 [#allocation11], 4
          %s272 = int_to_ptr.vmem [resolvable:$true] %s271
          %274 = dma.hbm_to_vmem [thread:$0]  %s4, 16, %s272, [#allocation10]
        $region28: #{_lambda_.1} parent=11 // pred_fallthru
          _
      $region12: #{_lambda_.1} parent=5 // pred_fallthru
        _
      %p275 = scmp.lt.s32.totalorder %s24, 2
      // Predicated region
      $region29: #{_lambda_.1} parent=5 // pred_check
        %p276 = pneg %p275
      $region30: #{_lambda_.1} parent=5 // pred_check_branch
        %278 = sbr.rel (%p276) target = $region32
      $region31: #{_lambda_.1} parent=5 // pred_region
        // Predicated region
        $region33: #{_lambda_.1} parent=31 // pred_check
          %p279 = pneg %p58
        $region34: #{_lambda_.1} parent=31 // pred_check_branch
          %281 = sbr.rel (%p279) target = $region36
        $region35: #{_lambda_.1} parent=31 // pred_region
          %s282 = sand.u32 %s48, 1
          %s283 = scalar_lea.sflag [#allocation4], %s282
          %s284 = sand.u32 %s48, 1
          %s285 = smul.addr %s284, 32
          %s286 = scalar_lea.vmem [#allocation3], %s285
          %s287 = smul.u32 8, %s31
          %s289 = ssub.s32 512, 512
          %290 = vsyncadd %s283, %s289
          %s291 = smul.addr %s32, 8
          %s292 = sadd.s32 %s287, %s291
          %s293 = smul.addr %s292, 64
          %s294 = scalar_lea.hbm %s0, %s293
          %s295 = sshll.u32 %s286, 4
          %s296 = int_to_ptr.vmem [resolvable:$true] %s295
          %301 = dma.hbm_to_vmem [thread:$0]  %s294, 512, %s296, %s283, 64, 64, 4
        $region36: #{_lambda_.1} parent=31 // pred_fallthru
          _
      $region32: #{_lambda_.1} parent=5 // pred_fallthru
        _
      %p302 = scmp.le.s32.totalorder 1, %s24
      %p303 = scmp.lt.s32.totalorder %s24, 3
      %p304 = pnand %p302, %p303
      %p305 = pneg %p304
      // Predicated region
      $region37: #{_lambda_.1} parent=5 // pred_check
        _
      $region38: #{_lambda_.1} parent=5 // pred_check_branch
        %307 = sbr.rel (%p304) target = $region40
      $region39: #{_lambda_.1} parent=5 // pred_region
        %s308 = ssub.s32 %s24, 1
        %s309 = sand.u32 %s51, 1
        %s310 = scalar_lea.sflag [#allocation4], %s309
        %s311 = sand.u32 %s51, 1
        %s312 = smul.addr %s311, 32
        %s313 = scalar_lea.vmem [#allocation3], %s312
        // Predicated region
        $region41: #{_lambda_.1} parent=39 // pred_check
          %p314 = pneg %p64
        $region42: #{_lambda_.1} parent=39 // pred_check_branch
          %316 = sbr.rel (%p314) target = $region44
        $region43: #{_lambda_.1} parent=39 // pred_region
          %317 = dma.done %s310, 512
        $region44: #{_lambda_.1} parent=39 // pred_fallthru
          _
        // Predicated region
        $region45: #{_lambda_.1} parent=39 // pred_check
          %p318 = pneg %p85
        $region46: #{_lambda_.1} parent=39 // pred_check_branch
          %320 = sbr.rel (%p318) target = $region48
        $region47: #{_lambda_.1} parent=39 // pred_region
          %321 = dma.done [#allocation7], 192
        $region48: #{_lambda_.1} parent=39 // pred_fallthru
          _
        // Predicated region
        $region49: #{_lambda_.1} parent=39 // pred_check
          %p322 = pneg %p111
        $region50: #{_lambda_.1} parent=39 // pred_check_branch
          %324 = sbr.rel (%p322) target = $region52
        $region51: #{_lambda_.1} parent=39 // pred_region
          %325 = dma.done [#allocation7], 512
        $region52: #{_lambda_.1} parent=39 // pred_fallthru
          _
        // Predicated region
        $region53: #{_lambda_.1} parent=39 // pred_check
          %p326 = pneg %p132
        $region54: #{_lambda_.1} parent=39 // pred_check_branch
          %328 = sbr.rel (%p326) target = $region56
        $region55: #{_lambda_.1} parent=39 // pred_region
          %329 = dma.done [#allocation10], 16
        $region56: #{_lambda_.1} parent=39 // pred_fallthru
          _
        // Predicated region
        $region57: #{_lambda_.1} parent=39 // pred_check
          %p330 = pneg %p153
        $region58: #{_lambda_.1} parent=39 // pred_check_branch
          %332 = sbr.rel (%p330) target = $region60
        $region59: #{_lambda_.1} parent=39 // pred_region
          %333 = dma.done [#allocation10], 16
        $region60: #{_lambda_.1} parent=39 // pred_fallthru
          _
        %s334 = sand.u32 %s51, 1
        %s335 = scalar_lea.sflag [#allocation4], %s334
        %s336 = sand.u32 %s51, 1
        %s337 = smul.addr %s336, 32
        %s338 = scalar_lea.vmem [#allocation3], %s337
        %p339 = pneg %p64
        %p340 = pneg %p61
        %p341 = pneg %p85
        %p342 = pneg %p82
        %p343 = pneg %p111
        %p344 = pneg %p108
        %p345 = pneg %p132
        %p346 = pneg %p129
        %p347 = pneg %p153
        %p348 = pneg %p150
        %p349 = pneg %p181
        %p350 = pneg %p178
        %s351 = sand.u32 %s168, 1
        %s352 = scalar_lea.sflag [#allocation5], %s351
        %s353 = sand.u32 %s168, 1
        %s354 = smul.addr %s353, 4
        %s355 = scalar_lea.vmem [#allocation12], %s354
        %p356 = pneg %p209
        %p357 = pneg %p206
        %s358 = sand.u32 %s196, 1
        %s359 = scalar_lea.sflag [#allocation14], %s358
        %s360 = sand.u32 %s196, 1
        %s361 = smul.addr %s360, 32
        %s362 = scalar_lea.vmem [#allocation13], %s361
        %s363 = smul.u32 8, %s33
        %s364 = smul.u32 8, %s33
        %s365 = smul.u32 8, %s33
        %v367 = vld [vmem:[%s313] sm:$0xf]
        %v368 = vld [vmem:[%s313 + $0x4] sm:$0xf]
        %v369 = vld [vmem:[%s313 + $0x8] sm:$0xf]
        %v370 = vld [vmem:[%s313 + $0xc] sm:$0xf]
        %v371 = vld [vmem:[%s313 + $0x10] sm:$0xf]
        %v372 = vld [vmem:[%s313 + $0x14] sm:$0xf]
        %v373 = vld [vmem:[%s313 + $0x18] sm:$0xf]
        %v374 = vld [vmem:[%s313 + $0x1c] sm:$0xf]
        %v375 = vld [vmem:[#allocation6] sm:$0xf]
        %v376 = vld [vmem:[#allocation6 + $0x4] sm:$0xf]
        %v377 = vld [vmem:[#allocation6 + $0x8] sm:$0xf]
        %v378 = vld [vmem:[#allocation8] sm:$0xf]
        %v379 = vld [vmem:[#allocation8 + $0x4] sm:$0xf]
        %v380 = vld [vmem:[#allocation8 + $0x8] sm:$0xf]
        %v381 = vld [vmem:[#allocation8 + $0xc] sm:$0xf]
        %v382 = vld [vmem:[#allocation8 + $0x10] sm:$0xf]
        %v383 = vld [vmem:[#allocation8 + $0x14] sm:$0xf]
        %v384 = vld [vmem:[#allocation8 + $0x18] sm:$0xf]
        %v385 = vld [vmem:[#allocation8 + $0x1c] sm:$0xf]
        %v386 = vunpack.c.l.bf16 %v378
        %v387 = vunpack.c.l.bf16 %v379
        %v388 = vunpack.c.l.bf16 %v380
        %v389 = vunpack.c.l.bf16 %v381
        %v390 = vunpack.c.l.bf16 %v382
        %v391 = vunpack.c.l.bf16 %v383
        %v392 = vunpack.c.l.bf16 %v384
        %v393 = vunpack.c.l.bf16 %v385
        %v402 = vunpack.c.l.b16 %v367
        %v403 = vunpack.c.l.b16 %v368
        %v404 = vunpack.c.l.b16 %v369
        %v405 = vunpack.c.l.b16 %v370
        %v406 = vunpack.c.l.b16 %v371
        %v407 = vunpack.c.l.b16 %v372
        %v408 = vunpack.c.l.b16 %v373
        %v409 = vunpack.c.l.b16 %v374
        %v410 = vpack.c.b16 %v403, %v402
        %v411 = vpack.c.b16 %v405, %v404
        %v412 = vpack.c.b16 %v407, %v406
        %v413 = vpack.c.b16 %v409, %v408
        %v417 = vunpack.c.l.b16 %v375
        %v418 = vunpack.c.l.b16 %v376
        %v419 = vunpack.c.l.b16 %v377
        %v420 = vpack.c.b16 %v418, %v417
        %v421 = vpack.c.b16 %v419, %v419
        %vm423 = vcmask 195584
        %v425 = vsel %vm423, %v410, 0
        %v428 = vsel %vm423, %v411, 0
        %v431 = vsel %vm423, %v412, 0
        %v434 = vsel %vm423, %v413, 0
        %vm436 = vcmask 1043456
        %v438 = vsel %vm436, %v421, 0
        %440 = vmatprep.subr.bf16.mxu0 0
        %441 = vmatpush1.bf16.msra.mxu0 %v420
        %442 = vmatprep.subr.bf16.mxu0 0
        %443 = vmatpush1.bf16.msra.mxu0 %v438
        %444 = vmatprep.subr.bf16.mxu0 0
        %445 = vmatpush1.bf16.msra.mxu0 0
        %446 = vmatprep.subr.bf16.mxu0 0
        %447 = vmatpush1.bf16.msra.mxu0 0
        %448 = vmatprep.subr.bf16.mxu0 0
        %449 = vmatpush1.bf16.msra.mxu0 0
        %450 = vmatprep.subr.bf16.mxu0 0
        %451 = vmatpush1.bf16.msra.mxu0 0
        %452 = vmatprep.subr.bf16.mxu0 0
        %453 = vmatpush1.bf16.msra.mxu0 0
        %454 = vmatprep.subr.bf16.mxu0 0
        %455 = vmatpush1.bf16.msra.mxu0 0
        %456 = vmatprep.subr.bf16.mxu0 0
        %457 = vmatpush1.bf16.msra.mxu0 0
        %458 = vmatprep.subr.bf16.mxu0 0
        %459 = vmatpush1.bf16.msra.mxu0 0
        %460 = vmatprep.subr.bf16.mxu0 0
        %461 = vmatpush1.bf16.msra.mxu0 0
        %462 = vmatprep.subr.bf16.mxu0 0
        %463 = vmatpush1.bf16.msra.mxu0 0
        %464 = vmatprep.subr.bf16.mxu0 0
        %465 = vmatpush1.bf16.msra.mxu0 0
        %466 = vmatprep.subr.bf16.mxu0 0
        %467 = vmatpush1.bf16.msra.mxu0 0
        %468 = vmatprep.subr.bf16.mxu0 0
        %469 = vmatpush1.bf16.msra.mxu0 0
        %470 = vmatprep.subr.bf16.mxu0 0
        %471 = vmatpush1.bf16.msra.mxu0 0
        %472 = vmatprep.mubr.bf16.mxu0 0
        %473 = vmatmul.mubr.bf16.gmra.mrb[0].mxu0 %v425
        %v474 = vpop.f32.mrb[0].mxu0
        %v475 = vadd.f32 %v386, %v474
        %v476 = vpop.f32.mrb[0].mxu0
        %v477 = vpop.f32.mrb[0].mxu0
        %v478 = vadd.f32 %v387, %v477
        %v479 = vpop.f32.mrb[0].mxu0
        %480 = vmatprep.mubr.bf16.mxu0 0
        %481 = vmatmul.mubr.bf16.gmra.mrb[0].mxu0 %v428
        %v482 = vpop.f32.mrb[0].mxu0
        %v483 = vadd.f32 %v388, %v482
        %v484 = vpop.f32.mrb[0].mxu0
        %v485 = vpop.f32.mrb[0].mxu0
        %v486 = vadd.f32 %v389, %v485
        %v487 = vpop.f32.mrb[0].mxu0
        %488 = vmatprep.mubr.bf16.mxu0 0
        %489 = vmatmul.mubr.bf16.gmra.mrb[0].mxu0 %v431
        %v490 = vpop.f32.mrb[0].mxu0
        %v491 = vadd.f32 %v390, %v490
        %v492 = vpop.f32.mrb[0].mxu0
        %v493 = vpop.f32.mrb[0].mxu0
        %v494 = vadd.f32 %v391, %v493
        %v495 = vpop.f32.mrb[0].mxu0
        %496 = vmatprep.mubr.bf16.mxu0 0
        %497 = vmatmul.mubr.bf16.gmra.mrb[0].mxu0 %v434
        %v498 = vpop.f32.mrb[0].mxu0
        %v499 = vadd.f32 %v392, %v498
        %v500 = vpop.f32.mrb[0].mxu0
        %v501 = vpop.f32.mrb[0].mxu0
        %v502 = vadd.f32 %v393, %v501
        %v503 = vpop.f32.mrb[0].mxu0
        %504 = vdwg.mxu0
        %v505 = vld [vmem:[#allocation9] sm:$0x1]
        %v506 = vld [vmem:[#allocation11] sm:$0x1]
        %vm507 = vcmask 261120
        %v508 = vsel %vm507, %v475, 0.0
        %509 = vadd.xlane.f32.xlu0 %v508
        %v510 = vpop.xlane.xlu0 %509
        %v511 = vsel %vm507, %v478, 0.0
        %512 = vadd.xlane.f32.xlu0 %v511
        %v513 = vpop.xlane.xlu0 %512
        %v514 = vsel %vm507, %v483, 0.0
        %515 = vadd.xlane.f32.xlu0 %v514
        %v516 = vpop.xlane.xlu0 %515
        %v517 = vsel %vm507, %v486, 0.0
        %518 = vadd.xlane.f32.xlu0 %v517
        %v519 = vpop.xlane.xlu0 %518
        %v520 = vsel %vm507, %v491, 0.0
        %521 = vadd.xlane.f32.xlu0 %v520
        %v522 = vpop.xlane.xlu0 %521
        %v523 = vsel %vm507, %v494, 0.0
        %524 = vadd.xlane.f32.xlu0 %v523
        %v525 = vpop.xlane.xlu0 %524
        %v526 = vsel %vm507, %v499, 0.0
        %527 = vadd.xlane.f32.xlu0 %v526
        %v528 = vpop.xlane.xlu0 %527
        %v529 = vsel %vm507, %v502, 0.0
        %530 = vadd.xlane.f32.xlu0 %v529
        %v531 = vpop.xlane.xlu0 %530
        %v532 = vrcp.pop 32.0
        %v533 = vmul.f32 %v510, %v532
        %v534 = vmul.f32 %v513, %v532
        %v535 = vmul.f32 %v516, %v532
        %v536 = vmul.f32 %v519, %v532
        %v537 = vmul.f32 %v522, %v532
        %v538 = vmul.f32 %v525, %v532
        %v539 = vmul.f32 %v528, %v532
        %v540 = vmul.f32 %v531, %v532
        %v541 = vsub.f32 %v475, %v533
        %v542 = vsub.f32 %v478, %v534
        %v543 = vsub.f32 %v483, %v535
        %v544 = vsub.f32 %v486, %v536
        %v545 = vsub.f32 %v491, %v537
        %v546 = vsub.f32 %v494, %v538
        %v547 = vsub.f32 %v499, %v539
        %v548 = vsub.f32 %v502, %v540
        %v549 = vmul.f32 %v541, %v541
        %v550 = vmul.f32 %v542, %v542
        %v551 = vmul.f32 %v543, %v543
        %v552 = vmul.f32 %v544, %v544
        %v553 = vmul.f32 %v545, %v545
        %v554 = vmul.f32 %v546, %v546
        %v555 = vmul.f32 %v547, %v547
        %v556 = vmul.f32 %v548, %v548
        %v557 = vsel %vm507, %v549, 0.0
        %558 = vadd.xlane.f32.xlu0 %v557
        %v559 = vpop.xlane.xlu0 %558
        %v560 = vsel %vm507, %v550, 0.0
        %561 = vadd.xlane.f32.xlu0 %v560
        %v562 = vpop.xlane.xlu0 %561
        %v563 = vsel %vm507, %v551, 0.0
        %564 = vadd.xlane.f32.xlu0 %v563
        %v565 = vpop.xlane.xlu0 %564
        %v566 = vsel %vm507, %v552, 0.0
        %567 = vadd.xlane.f32.xlu0 %v566
        %v568 = vpop.xlane.xlu0 %567
        %v569 = vsel %vm507, %v553, 0.0
        %570 = vadd.xlane.f32.xlu0 %v569
        %v571 = vpop.xlane.xlu0 %570
        %v572 = vsel %vm507, %v554, 0.0
        %573 = vadd.xlane.f32.xlu0 %v572
        %v574 = vpop.xlane.xlu0 %573
        %v575 = vsel %vm507, %v555, 0.0
        %576 = vadd.xlane.f32.xlu0 %v575
        %v577 = vpop.xlane.xlu0 %576
        %v578 = vsel %vm507, %v556, 0.0
        %579 = vadd.xlane.f32.xlu0 %v578
        %v580 = vpop.xlane.xlu0 %579
        %v581 = vmul.f32 %v559, %v532
        %v582 = vmul.f32 %v562, %v532
        %v583 = vmul.f32 %v565, %v532
        %v584 = vmul.f32 %v568, %v532
        %v585 = vmul.f32 %v571, %v532
        %v586 = vmul.f32 %v574, %v532
        %v587 = vmul.f32 %v577, %v532
        %v588 = vmul.f32 %v580, %v532
        %v589 = vadd.f32 %v581, 1e-05
        %v590 = vadd.f32 %v582, 1e-05
        %v591 = vadd.f32 %v583, 1e-05
        %v592 = vadd.f32 %v584, 1e-05
        %v593 = vadd.f32 %v585, 1e-05
        %v594 = vadd.f32 %v586, 1e-05
        %v595 = vadd.f32 %v587, 1e-05
        %v596 = vadd.f32 %v588, 1e-05
        %v597 = vrsqrt.pop %v589
        %v598 = vrsqrt.pop %v590
        %v599 = vrsqrt.pop %v591
        %v600 = vrsqrt.pop %v592
        %v601 = vrsqrt.pop %v593
        %v602 = vrsqrt.pop %v594
        %v603 = vrsqrt.pop %v595
        %v604 = vrsqrt.pop %v596
        %v605 = vmul.f32 %v541, %v597
        %v606 = vmul.f32 %v542, %v598
        %v607 = vmul.f32 %v543, %v599
        %v608 = vmul.f32 %v544, %v600
        %v609 = vmul.f32 %v545, %v601
        %v610 = vmul.f32 %v546, %v602
        %v611 = vmul.f32 %v547, %v603
        %v612 = vmul.f32 %v548, %v604
        %v614 = vlaneseq
        %v615 = vshrl.u32 %v614, 7
        %v616 = vsub.s32 0, %v615
        %v617 = vrot.slane %v505, %v616
        %v619 = vmul.f32 %v605, %v617
        %v620 = vmul.f32 %v606, %v617
        %v621 = vmul.f32 %v607, %v617
        %v622 = vmul.f32 %v608, %v617
        %v623 = vmul.f32 %v609, %v617
        %v624 = vmul.f32 %v610, %v617
        %v625 = vmul.f32 %v611, %v617
        %v626 = vmul.f32 %v612, %v617
        %v628 = vlaneseq
        %v629 = vshrl.u32 %v628, 7
        %v630 = vsub.s32 0, %v629
        %v631 = vrot.slane %v506, %v630
        %v633 = vadd.f32 %v619, %v631
        %v634 = vadd.f32 %v620, %v631
        %v635 = vadd.f32 %v621, %v631
        %v636 = vadd.f32 %v622, %v631
        %v637 = vadd.f32 %v623, %v631
        %v638 = vadd.f32 %v624, %v631
        %v639 = vadd.f32 %v625, %v631
        %v640 = vadd.f32 %v626, %v631
        %v641 = vpack.c.bf16 %v634, %v633
        %v642 = vpack.c.bf16 %v636, %v635
        %v643 = vpack.c.bf16 %v638, %v637
        %v644 = vpack.c.bf16 %v640, %v639
        %v649 = vunpack.c.l.b16 %v641
        %v650 = vunpack.c.h.b16 %v641
        %v651 = vunpack.c.l.b16 %v642
        %v652 = vunpack.c.h.b16 %v642
        %v653 = vunpack.c.l.b16 %v643
        %v654 = vunpack.c.h.b16 %v643
        %v655 = vunpack.c.l.b16 %v644
        %v656 = vunpack.c.h.b16 %v644
        %v657 = vpack.c.b16 %v649, %v649
        %v658 = vpack.c.b16 %v650, %v650
        %v659 = vpack.c.b16 %v651, %v651
        %v660 = vpack.c.b16 %v652, %v652
        %v661 = vpack.c.b16 %v653, %v653
        %v662 = vpack.c.b16 %v654, %v654
        %v663 = vpack.c.b16 %v655, %v655
        %v664 = vpack.c.b16 %v656, %v656
        %vm673 = vcmask 257024
        %674 = vst.msk [vmem:[%s362] sm:$0xf] %vm673, %v657
        %675 = vst.msk [vmem:[%s362 + $0x4] sm:$0xf] %vm673, %v658
        %676 = vst.msk [vmem:[%s362 + $0x8] sm:$0xf] %vm673, %v659
        %677 = vst.msk [vmem:[%s362 + $0xc] sm:$0xf] %vm673, %v660
        %678 = vst.msk [vmem:[%s362 + $0x10] sm:$0xf] %vm673, %v661
        %679 = vst.msk [vmem:[%s362 + $0x14] sm:$0xf] %vm673, %v662
        %680 = vst.msk [vmem:[%s362 + $0x18] sm:$0xf] %vm673, %v663
        %681 = vst.msk [vmem:[%s362 + $0x1c] sm:$0xf] %vm673, %v664
        %v682 = vmax.f32 %v475, %v483
        %v683 = vmax.f32 %v478, %v486
        %v685 = vrot.slane %v682, 4
        %v687 = vmax.f32 %v682, %v685
        %688 = vst.msk [vmem:[#allocation2] sm:$0xf] %vm673, %v687
        %v690 = vrot.slane %v683, 4
        %v692 = vmax.f32 %v683, %v690
        %693 = vst.msk [vmem:[#allocation2 + $0x4] sm:$0xf] %vm673, %v692
        %v694 = vld [vmem:[#allocation2] ss:$2 sm:$0xf]
        %s695 = scalar_lea.vmem [#allocation2], 1
        %v696 = vld [vmem:[%s695] ss:$2 sm:$0xf]
        %v697 = vmax.f32 %v694, %v696
        %v698 = vsel %vm673, %v697, 0.0
        %699 = vadd.xlane.f32.xlu0 %v698
        %v700 = vpop.xlane.xlu0 %699
        %v701 = vmul.f32 %v700, %v532
        %v702 = vsub.f32 %v697, %v701
        %v703 = vmul.f32 %v702, %v702
        %v704 = vsel %vm673, %v703, 0.0
        %705 = vadd.xlane.f32.xlu0 %v704
        %v706 = vpop.xlane.xlu0 %705
        %v707 = vmul.f32 %v706, %v532
        %v708 = vadd.f32 %v707, 1e-05
        %v709 = vrsqrt.pop %v708
        %v710 = vmul.f32 %v702, %v709
        %v711 = vmul.f32 %v710, %v617
        %v712 = vadd.f32 %v711, %v631
        %v713 = vpack.c.bf16 %v712, %v712
        %vm714 = vcmask 254976
        %715 = vst.msk [vmem:[%s355] sm:$0x3] %vm714, %v713
        %v716 = vmax.f32 %v491, %v499
        %v717 = vmax.f32 %v494, %v502
        %v719 = vrot.slane %v716, 4
        %v721 = vmax.f32 %v716, %v719
        %722 = vst.msk [vmem:[#allocation2] sm:$0xf] %vm673, %v721
        %v724 = vrot.slane %v717, 4
        %v726 = vmax.f32 %v717, %v724
        %727 = vst.msk [vmem:[#allocation2 + $0x4] sm:$0xf] %vm673, %v726
        %v728 = vld [vmem:[#allocation2] ss:$2 sm:$0xf]
        %v729 = vld [vmem:[%s695] ss:$2 sm:$0xf]
        %v730 = vmax.f32 %v728, %v729
        %v731 = vsel %vm673, %v730, 0.0
        %732 = vadd.xlane.f32.xlu0 %v731
        %v733 = vpop.xlane.xlu0 %732
        %v734 = vmul.f32 %v733, %v532
        %v735 = vsub.f32 %v730, %v734
        %v736 = vmul.f32 %v735, %v735
        %v737 = vsel %vm673, %v736, 0.0
        %738 = vadd.xlane.f32.xlu0 %v737
        %v739 = vpop.xlane.xlu0 %738
        %v740 = vmul.f32 %v739, %v532
        %v741 = vadd.f32 %v740, 1e-05
        %v742 = vrsqrt.pop %v741
        %v743 = vmul.f32 %v735, %v742
        %v744 = vmul.f32 %v743, %v617
        %v745 = vadd.f32 %v744, %v631
        %v746 = vpack.c.bf16 %v745, %v745
        %v748 = vunpack.c.l.b16 %v746
        %v749 = vpack.c.b16 %v748, %v748
        %v750 = vrot.slane %v749, 6
        %vm752 = vcmask 257026
        %753 = vst.msk [vmem:[%s355] sm:$0xc] %vm752, %v750
        %s754 = sand.u32 %s168, 1
        %s755 = scalar_lea.sflag [#allocation5], %s754
        %s756 = sand.u32 %s168, 1
        %s757 = smul.addr %s756, 4
        %s758 = scalar_lea.vmem [#allocation12], %s757
        %s759 = sand.u32 %s196, 1
        %s760 = scalar_lea.sflag [#allocation14], %s759
        %s761 = sand.u32 %s196, 1
        %s762 = smul.addr %s761, 32
        %s763 = scalar_lea.vmem [#allocation13], %s762
        // Predicated region
        $region61: #{_lambda_.1} parent=39 // pred_check
          %p764 = pneg %p178
        $region62: #{_lambda_.1} parent=39 // pred_check_branch
          %766 = sbr.rel (%p764) target = $region64
        $region63: #{_lambda_.1} parent=39 // pred_region
          %s768 = ssub.s32 64, 64
          %769 = vsyncadd %s755, %s768
          %s770 = sadd.s32 %s33, %s34
          %s771 = smul.addr %s770, 64
          %s772 = scalar_lea.hbm %s5, %s771
          %s774 = sshll.u32 %s758, 4
          %s775 = int_to_ptr.vmem [resolvable:$true] %s774
          %777 = dma.vmem_to_hbm [thread:$0]  %s775, 64, %s772, %s755
        $region64: #{_lambda_.1} parent=39 // pred_fallthru
          _
        // Predicated region
        $region65: #{_lambda_.1} parent=39 // pred_check
          %p778 = pneg %p206
        $region66: #{_lambda_.1} parent=39 // pred_check_branch
          %780 = sbr.rel (%p778) target = $region68
        $region67: #{_lambda_.1} parent=39 // pred_region
          %s781 = smul.u32 8, %s33
          %s783 = ssub.s32 512, 512
          %784 = vsyncadd %s760, %s783
          %s785 = smul.addr %s34, 8
          %s786 = sadd.s32 %s781, %s785
          %s787 = smul.addr %s786, 64
          %s788 = scalar_lea.hbm %s6, %s787
          %s789 = sshll.u32 %s763, 4
          %s790 = int_to_ptr.vmem [resolvable:$true] %s789
          %795 = dma.vmem_to_hbm [thread:$0]  %s790, 512, %s788, %s760, 64, 64, 4
        $region68: #{_lambda_.1} parent=39 // pred_fallthru
          _
      $region40: #{_lambda_.1} parent=5 // pred_fallthru
        _
      %p796 = scmp.le.s32.totalorder 2, %s24
      // Predicated region
      $region69: #{_lambda_.1} parent=5 // pred_check
        %p797 = pneg %p796
      $region70: #{_lambda_.1} parent=5 // pred_check_branch
        %799 = sbr.rel (%p797) target = $region72
      $region71: #{_lambda_.1} parent=5 // pred_region
        %s800 = ssub.s32 %s24, 2
        // Predicated region
        $region73: #{_lambda_.1} parent=71 // pred_check
          %p801 = pneg %p184
        $region74: #{_lambda_.1} parent=71 // pred_check_branch
          %803 = sbr.rel (%p801) target = $region76
        $region75: #{_lambda_.1} parent=71 // pred_region
          %s804 = sand.u32 %s169, 1
          %s805 = scalar_lea.sflag [#allocation5], %s804
          %s806 = sand.u32 %s169, 1
          %s807 = smul.addr %s806, 4
          %s808 = scalar_lea.vmem [#allocation12], %s807
          %809 = dma.done %s805, 64
        $region76: #{_lambda_.1} parent=71 // pred_fallthru
          _
        // Predicated region
        $region77: #{_lambda_.1} parent=71 // pred_check
          %p810 = pneg %p212
        $region78: #{_lambda_.1} parent=71 // pred_check_branch
          %812 = sbr.rel (%p810) target = $region80
        $region79: #{_lambda_.1} parent=71 // pred_region
          %s813 = sand.u32 %s197, 1
          %s814 = scalar_lea.sflag [#allocation14], %s813
          %s815 = sand.u32 %s197, 1
          %s816 = smul.addr %s815, 32
          %s817 = scalar_lea.vmem [#allocation13], %s816
          %818 = dma.done %s814, 512
        $region80: #{_lambda_.1} parent=71 // pred_fallthru
          _
      $region72: #{_lambda_.1} parent=5 // pred_fallthru
        _
    $region6: #{_lambda_.1} parent=1 // loop_footer
      %s28 = sadd.s32 1, %s24
    $region7: #{_lambda_.1} parent=1 // loop_footer_branch
      %23 = sbr.rel target = $region3
    $region8: #{_lambda_.1} parent=1 // loop_exit
      _
    %819 = vsyncpa [#allocation4], 1
    %s820 = scalar_lea.sflag [#allocation4], 1
    %821 = vsyncpa %s820, 1
    %822 = vsyncpa [#allocation7], 1
    %823 = vsyncpa [#allocation10], 1
    %824 = vsyncpa [#allocation5], 1
    %s825 = scalar_lea.sflag [#allocation5], 1
    %826 = vsyncpa %s825, 1
    %827 = vsyncpa [#allocation14], 1
    %s828 = scalar_lea.sflag [#allocation14], 1
    %829 = vsyncpa %s828, 1

</llo_original>
